<compile_context>
chip_gen: v7x
topology: tpu7x:2x2x1
jax: 0.10.0
libtpu: 0.0.40
codegen_flags: <defaults>
</compile_context>

<pallas_src>
import jax
import jax.numpy as jnp
from jax.experimental import pallas as pl
from jax.experimental.pallas import tpu as pltpu

_LANE = 128
_SUBLANE = 8


def _round_up(n, m):
    return ((n + m - 1) // m) * m


def mlp_reverse_d_kernel(att_ref, x_ref, w1a_ref, w1x_ref, b1_ref, w2r_ref, b2_ref, o_ref):
    # fc1 on the (virtual) concatenated input as a split matmul — concat never built:
    #   concat(att, x) @ W1  ==  att @ W1[:att_size]  +  x @ W1[att_size:]
    h1 = jnp.dot(att_ref[...], w1a_ref[...], preferred_element_type=jnp.float32)
    h1 = h1 + jnp.dot(x_ref[...], w1x_ref[...], preferred_element_type=jnp.float32)
    h1 = h1 + b1_ref[...]
    # LeakyReLU(0.2): identical to where(h>0, h, 0.2h) for slope in (0,1); 1 fewer VALU op.
    h1 = jnp.maximum(h1, 0.2 * h1)

    # fc2 (single output column) as w2_row @ h1^T  ->  [1, tm]: batch lands on lanes,
    # so the store below is lane-dense (no 128x zero-padded write amplification).
    h1c = h1.astype(w2r_ref.dtype)          # no-op in f32; enables the bf16 option
    col = jax.lax.dot_general(
        w2r_ref[...], h1c,
        dimension_numbers=(((1,), (1,)), ((), ())),   # contract the hidden dim (NT matmul)
        preferred_element_type=jnp.float32,
    )
    col = col + b2_ref[...]                 # (1, tm) + (1, 1) broadcast
    o_ref[0] = col.astype(o_ref.dtype)      # o_ref block is (1, 1, tm)


def prepare_params(w1, b1, w2, b2, att_size, *, param_dtype=None):
    """One-time (hoisted) parameter prep.

    w1 : [att_size + res_size, dis_hu]  (in_features x out_features, i.e. transposed
                                         vs. torch's fc1.weight)
    b1 : [dis_hu]
    w2 : [dis_hu, 1]                    (transposed vs. torch's fc2.weight)
    b2 : [1]

    Splits w1 for the fused (never-materialized) concat, zero-pads the hidden dim to a
    multiple of 128 lanes, keeps fc2's single weight column as a [1, hu_p] ROW for the
    in-kernel NT matmul, and reshapes biases to 2-D.  Zero padding is exact: zero
    weight columns, zero bias, LeakyReLU(0)=0, zero fc2 weights in the pad.
    """
    d_in, hu = w1.shape
    hu_p = _round_up(hu, _LANE)

    w1_p = jnp.pad(w1, ((0, 0), (0, hu_p - hu)))
    w1a = w1_p[:att_size]                                          # [att_size, hu_p]
    w1x = w1_p[att_size:]                                          # [res_size, hu_p]
    b1_p = jnp.pad(b1, (0, hu_p - hu)).reshape(1, hu_p).astype(jnp.float32)
    w2_row = jnp.pad(w2[:, 0], (0, hu_p - hu)).reshape(1, hu_p)    # [1, hu_p]
    b2_p = jnp.asarray(b2, dtype=jnp.float32).reshape(1, 1)        # [1, 1]

    if param_dtype is not None:
        # e.g. jnp.bfloat16 on v6e/v7x: halves HBM read bytes; accumulation stays f32.
        w1a = w1a.astype(param_dtype)
        w1x = w1x.astype(param_dtype)
        w2_row = w2_row.astype(param_dtype)
    return (w1a, w1x, b1_p, w2_row, b2_p)


def _choose_tile(B, tm_max):
    b8 = _round_up(B, _SUBLANE)
    if b8 > tm_max:
        return tm_max                                # large batch: big lane-aligned tiles
    if b8 >= 256:
        # Fits in one step, but split into >=2 grid steps so ("parallel",) can shard
        # the batch across both TensorCores on v7x.
        return _round_up(b8 // 2, _LANE)
    return b8                                        # tiny batch: one un-tiled step


def mlp_reverse_d(att, x, params, *, tm_max=1024):
    """Fused forward of MLP_reverse_D: fc2(LeakyReLU_0.2(fc1(concat(att, x))))."""
    w1a, w1x, b1_p, w2_row, b2_p = params
    B, A = att.shape
    R = x.shape[1]
    hu_p = w1a.shape[1]

    # If params were prepared in bf16, cast activations to match (ideally the upstream
    # producer already emits bf16, making this a no-op).
    cdt = w1a.dtype
    if att.dtype != cdt:
        att = att.astype(cdt)
    if x.dtype != cdt:
        x = x.astype(cdt)

    tm = _choose_tile(B, tm_max)
    n_blocks = pl.cdiv(B, tm)   # ragged last block handled by Pallas — no jnp.pad copies

    out_packed = pl.pallas_call(
        mlp_reverse_d_kernel,
        out_shape=jax.ShapeDtypeStruct((n_blocks, 1, tm), jnp.float32),
        grid_spec=pltpu.PrefetchScalarGridSpec(
            num_scalar_prefetch=0,
            grid=(n_blocks,),
            in_specs=[
                pl.BlockSpec((tm, A), lambda i: (i, 0)),        # att tile (ragged tail ok)
                pl.BlockSpec((tm, R), lambda i: (i, 0)),        # x tile
                pl.BlockSpec((A, hu_p), lambda i: (0, 0)),      # w1[:att_size]   (resident)
                pl.BlockSpec((R, hu_p), lambda i: (0, 0)),      # w1[att_size:]   (resident)
                pl.BlockSpec((1, hu_p), lambda i: (0, 0)),      # b1
                pl.BlockSpec((1, hu_p), lambda i: (0, 0)),      # fc2 weight column (as a row)
                pl.BlockSpec((1, 1), lambda i: (0, 0)),         # b2
            ],
            out_specs=pl.BlockSpec((1, 1, tm), lambda i: (i, 0, 0)),  # lane-packed batch
        ),
        compiler_params=pltpu.CompilerParams(
            dimension_semantics=("parallel",),   # batch steps shard across TCs (v7x)
        ),
    )(att, x, w1a, w1x, b1_p, w2_row, b2_p)

    # (n_blocks, 1, tm) -> flat batch (free reshape), drop ragged-tail garbage rows,
    # restore the module's [B, 1] output shape.
    return out_packed.reshape(n_blocks * tm)[:B].reshape(B, 1)


if __name__ == "__main__":
    # opt.att_size = 32, opt.res_size = 64, opt.dis_hu = 64, batch = 16
    batch, att_size, res_size, dis_hu = 16, 32, 64, 64

    key = jax.random.PRNGKey(0)
    ka, kx, kw1, kw2 = jax.random.split(key, 4)

    att = jax.random.normal(ka, (batch, att_size), dtype=jnp.float32)
    x = jax.random.normal(kx, (batch, res_size), dtype=jnp.float32)

    # weights_init(): Linear weight ~ N(0, 0.02), bias = 0.
    # (stored as in_features x out_features, i.e. transposed vs torch, so the kernel
    #  computes x @ W + b — same math as torch's x @ W.T + b)
    w1 = 0.02 * jax.random.normal(kw1, (att_size + res_size, dis_hu), dtype=jnp.float32)
    b1 = jnp.zeros((dis_hu,), dtype=jnp.float32)
    w2 = 0.02 * jax.random.normal(kw2, (dis_hu, 1), dtype=jnp.float32)
    b2 = jnp.zeros((1,), dtype=jnp.float32)

    params = prepare_params(w1, b1, w2, b2, att_size)   # param_dtype=jnp.bfloat16 optional
    out = mlp_reverse_d(att, x, params)
    out = jax.block_until_ready(out)

    # pure-JAX reference (identical to the PyTorch forward)
    _in = jnp.concatenate([att, x], axis=1)
    h1 = _in @ w1 + b1
    h1 = jnp.where(h1 > 0, h1, 0.2 * h1)
    ref = h1 @ w2 + b2

    assert out.shape == (batch, 1)
    assert jnp.allclose(out, ref, atol=1e-5, rtol=1e-5)

    print("KERNEL_OK")
</pallas_src>

<mosaic_0001>
module attributes {stable_mosaic.version = 11 : i64} {
  func.func @mlp_reverse_d_kernel(%arg0: i32, %arg1: memref<16x32xf32, #tpu.memory_space<vmem>>, %arg2: memref<16x64xf32, #tpu.memory_space<vmem>>, %arg3: memref<32x128xf32, #tpu.memory_space<vmem>>, %arg4: memref<64x128xf32, #tpu.memory_space<vmem>>, %arg5: memref<1x128xf32, #tpu.memory_space<vmem>>, %arg6: memref<1x128xf32, #tpu.memory_space<vmem>>, %arg7: memref<1x1xf32, #tpu.memory_space<vmem>>, %arg8: memref<1x1x16xf32, #tpu.memory_space<vmem>>) attributes {dimension_semantics = [#tpu.dimension_semantics<parallel>], iteration_bounds = array<i64: 1>, scalar_prefetch = 0 : i64, scratch_operands = 0 : i64, tpu.core_type = #tpu.core_type<tc>, window_params = [{transform_indices = @transform_0, window_bounds = array<i64: 16, 32>}, {transform_indices = @transform_1, window_bounds = array<i64: 16, 64>}, {pipeline_mode = #tpu.pipeline_mode<synchronous>, transform_indices = @transform_2, window_bounds = array<i64: 32, 128>}, {pipeline_mode = #tpu.pipeline_mode<synchronous>, transform_indices = @transform_3, window_bounds = array<i64: 64, 128>}, {pipeline_mode = #tpu.pipeline_mode<synchronous>, transform_indices = @transform_4, window_bounds = array<i64: 1, 128>}, {pipeline_mode = #tpu.pipeline_mode<synchronous>, transform_indices = @transform_5, window_bounds = array<i64: 1, 128>}, {pipeline_mode = #tpu.pipeline_mode<synchronous>, transform_indices = @transform_6, window_bounds = array<i64: 1, 1>}, {transform_indices = @transform_7, window_bounds = array<i64: 1, 1, 16>}]} {
    %c0 = arith.constant 0 : index
    %c0_0 = arith.constant 0 : index
    %0 = vector.load %arg1[%c0, %c0_0] : memref<16x32xf32, #tpu.memory_space<vmem>>, vector<16x32xf32>
    %c0_1 = arith.constant 0 : index
    %c0_2 = arith.constant 0 : index
    %1 = vector.load %arg3[%c0_1, %c0_2] : memref<32x128xf32, #tpu.memory_space<vmem>>, vector<32x128xf32>
    %cst = arith.constant dense<0.000000e+00> : vector<16x128xf32>
    %2 = tpu.matmul %0, %1, %cst {dimension_numbers = #tpu.dot_dimension_numbers<[1], [0], [0], [1], [0, 0, 1, 1], [], []>} : vector<16x32xf32>, vector<32x128xf32>, vector<16x128xf32> -> vector<16x128xf32>
    %c0_3 = arith.constant 0 : index
    %c0_4 = arith.constant 0 : index
    %3 = vector.load %arg2[%c0_3, %c0_4] : memref<16x64xf32, #tpu.memory_space<vmem>>, vector<16x64xf32>
    %c0_5 = arith.constant 0 : index
    %c0_6 = arith.constant 0 : index
    %4 = vector.load %arg4[%c0_5, %c0_6] : memref<64x128xf32, #tpu.memory_space<vmem>>, vector<64x128xf32>
    %cst_7 = arith.constant dense<0.000000e+00> : vector<16x128xf32>
    %5 = tpu.matmul %3, %4, %cst_7 {dimension_numbers = #tpu.dot_dimension_numbers<[1], [0], [0], [1], [0, 0, 1, 1], [], []>} : vector<16x64xf32>, vector<64x128xf32>, vector<16x128xf32> -> vector<16x128xf32>
    %6 = arith.addf %2, %5 : vector<16x128xf32>
    %c0_8 = arith.constant 0 : index
    %c0_9 = arith.constant 0 : index
    %7 = vector.load %arg5[%c0_8, %c0_9] : memref<1x128xf32, #tpu.memory_space<vmem>>, vector<1x128xf32>
    %8 = vector.broadcast %7 : vector<1x128xf32> to vector<16x128xf32>
    %9 = arith.addf %6, %8 : vector<16x128xf32>
    %cst_10 = arith.constant 2.000000e-01 : f32
    %10 = vector.broadcast %cst_10 : f32 to vector<16x128xf32>
    %11 = arith.mulf %10, %9 : vector<16x128xf32>
    %12 = arith.maximumf %9, %11 : vector<16x128xf32>
    %c0_11 = arith.constant 0 : index
    %c0_12 = arith.constant 0 : index
    %13 = vector.load %arg6[%c0_11, %c0_12] : memref<1x128xf32, #tpu.memory_space<vmem>>, vector<1x128xf32>
    %cst_13 = arith.constant dense<0.000000e+00> : vector<1x16xf32>
    %14 = tpu.matmul %13, %12, %cst_13 {dimension_numbers = #tpu.dot_dimension_numbers<[1], [1], [0], [0], [0, 0, 1, 0], [], []>} : vector<1x128xf32>, vector<16x128xf32>, vector<1x16xf32> -> vector<1x16xf32>
    %c0_14 = arith.constant 0 : index
    %c0_15 = arith.constant 0 : index
    %15 = vector.load %arg7[%c0_14, %c0_15] : memref<1x1xf32, #tpu.memory_space<vmem>>, vector<1x1xf32>
    %16 = vector.broadcast %15 : vector<1x1xf32> to vector<1x16xf32>
    %17 = arith.addf %14, %16 : vector<1x16xf32>
    %c0_16 = arith.constant 0 : index
    %c0_17 = arith.constant 0 : index
    %c0_18 = arith.constant 0 : index
    %18 = vector.load %arg8[%c0_16, %c0_17, %c0_18] : memref<1x1x16xf32, #tpu.memory_space<vmem>>, vector<1x1x16xf32>
    %19 = vector.shape_cast %18 : vector<1x1x16xf32> to vector<1x16xf32>
    %20 = vector.shape_cast %17 : vector<1x16xf32> to vector<1x1x16xf32>
    tpu.vector_store %arg8[%c0_16, %c0_17, %c0_18], %20 {strides = array<i32>} : memref<1x1x16xf32, #tpu.memory_space<vmem>>, vector<1x1x16xf32>,
    return
  }
  func.func @transform_0(%arg0: i32) -> (i32, i32) {
    %c0_i32 = arith.constant 0 : i32
    %c0_i32_0 = arith.constant 0 : i32
    return %arg0, %c0_i32 : i32, i32
  }
  func.func @transform_1(%arg0: i32) -> (i32, i32) {
    %c0_i32 = arith.constant 0 : i32
    %c0_i32_0 = arith.constant 0 : i32
    return %arg0, %c0_i32 : i32, i32
  }
  func.func @transform_2(%arg0: i32) -> (i32, i32) {
    %c0_i32 = arith.constant 0 : i32
    %c0_i32_0 = arith.constant 0 : i32
    %c0_i32_1 = arith.constant 0 : i32
    return %c0_i32, %c0_i32_0 : i32, i32
  }
  func.func @transform_3(%arg0: i32) -> (i32, i32) {
    %c0_i32 = arith.constant 0 : i32
    %c0_i32_0 = arith.constant 0 : i32
    %c0_i32_1 = arith.constant 0 : i32
    return %c0_i32, %c0_i32_0 : i32, i32
  }
  func.func @transform_4(%arg0: i32) -> (i32, i32) {
    %c0_i32 = arith.constant 0 : i32
    %c0_i32_0 = arith.constant 0 : i32
    %c0_i32_1 = arith.constant 0 : i32
    return %c0_i32, %c0_i32_0 : i32, i32
  }
  func.func @transform_5(%arg0: i32) -> (i32, i32) {
    %c0_i32 = arith.constant 0 : i32
    %c0_i32_0 = arith.constant 0 : i32
    %c0_i32_1 = arith.constant 0 : i32
    return %c0_i32, %c0_i32_0 : i32, i32
  }
  func.func @transform_6(%arg0: i32) -> (i32, i32) {
    %c0_i32 = arith.constant 0 : i32
    %c0_i32_0 = arith.constant 0 : i32
    %c0_i32_1 = arith.constant 0 : i32
    return %c0_i32, %c0_i32_0 : i32, i32
  }
  func.func @transform_7(%arg0: i32) -> (i32, i32, i32) {
    %c0_i32 = arith.constant 0 : i32
    %c0_i32_0 = arith.constant 0 : i32
    %c0_i32_1 = arith.constant 0 : i32
    return %arg0, %c0_i32, %c0_i32_0 : i32, i32, i32
  }
}

</mosaic_0001>

<llo_original>
// kernel: tpu_custom_call.1
$region0: #{tpu_custom_call.1}
  #allocation0 [shape = 'u32[]', space=smem, size = 0x4, offset = 0x4, fixed_abs, tag = 'smem constant byte address 0x4 - core index']
  #allocation1 [shape = 'u32[144,128]{1,0:T(1,128)}', space=vmem, size = 0x12000, scoped, tag = 'internal scratch']
  #allocation2 [shape = 'f32[1,1]{1,0:T(1,128)S(1)}', space=vmem, size = 0x200, scoped, tag = 'scoped memory for tpu_custom_call.1']
  %s0 = inlined_call_operand.hbm [shape: f32[16,32], index: 0, kind: input, shape index: {}]
  %s1 = inlined_call_operand.hbm [shape: f32[16,64], index: 1, kind: input, shape index: {}]
  %s2 = inlined_call_operand.hbm [shape: f32[32,128], index: 2, kind: input, shape index: {}]
  %s3 = inlined_call_operand.hbm [shape: f32[64,128], index: 3, kind: input, shape index: {}]
  %s4 = inlined_call_operand.vmem [shape: f32[1,128], index: 4, kind: input, shape index: {}]
  %s5 = inlined_call_operand.vmem [shape: f32[1,128], index: 5, kind: input, shape index: {}]
  %s6 = inlined_call_operand.<no memory space> [shape: f32[1,1], index: 6, kind: input, shape index: {}]
  %s7 = inlined_call_operand.hbm [shape: f32[1,1,16], index: 7, kind: output, shape index: {}]
  %s8 = sld [smem:[#allocation0]]
  $region54: #{tpu_custom_call.1} parent=0
    _
  %s10 = ssub.s32 1, %s8
  %s11 = scalar_select 0, %s10, %s8
  %v12 = vstv %s6
  %13 = vst [vmem:[#allocation2] sm:$0x1] %v12
  $region1: #{tpu_custom_call.1} parent=0
    #allocation3 [shape = 'u8[8192]{0}', space=vmem, size = 0x2000, scoped, tag = 'input window, operand 0, single buffered']
    #allocation4 [shape = 's32[1]{0}', space=sflag, size = 0x4, scoped, tag = 'scoped memory for tpu_custom_call.1']
    #allocation5 [shape = 's32[1]{0}', space=sflag, size = 0x4, scoped, tag = 'scoped memory for tpu_custom_call.1']
    #allocation6 [shape = 'u8[8192]{0}', space=vmem, size = 0x2000, scoped, tag = 'input window, operand 1, single buffered']
    #allocation7 [shape = 's32[1]{0}', space=sflag, size = 0x4, scoped, tag = 'scoped memory for tpu_custom_call.1']
    #allocation8 [shape = 'u8[16384]{0}', space=vmem, size = 0x4000, scoped, tag = 'input window, operand 2, single buffered']
    #allocation9 [shape = 'u8[32768]{0}', space=vmem, size = 0x8000, scoped, tag = 'input window, operand 3, single buffered']
    #allocation10 [shape = 's32[1]{0}', space=sflag, size = 0x4, scoped, tag = 'scoped memory for tpu_custom_call.1']
    #allocation11 [shape = 'u8[512]{0}', space=vmem, size = 0x400, scoped, tag = 'output window, operand 0, single buffered']
    %14 = vsyncpa [#allocation4], 0
    %15 = vsyncpa [#allocation7], 0
    %16 = vsyncpa [#allocation10], 0
    %17 = vsyncpa [#allocation5], 0
    // Predicated region
    $region2: #{tpu_custom_call.1} parent=1 // pred_check
      _
    $region3: #{tpu_custom_call.1} parent=1 // pred_check_branch
      %19 = sbr.rel (0) target = $region5
    $region4: #{tpu_custom_call.1} parent=1 // pred_region
      %s21 = ssub.s32 256, 256
      %22 = vsyncadd [#allocation4], %s21
      %s23 = sshll.u32 [#allocation3], 4
      %s24 = int_to_ptr.vmem [resolvable:$true] %s23
      %29 = dma.hbm_to_vmem [thread:$0]  %s0, 256, %s24, [#allocation4], 128, 128, 8
    $region5: #{tpu_custom_call.1} parent=1 // pred_fallthru
      _
    // Predicated region
    $region6: #{tpu_custom_call.1} parent=1 // pred_check
      _
    $region7: #{tpu_custom_call.1} parent=1 // pred_check_branch
      %31 = sbr.rel (0) target = $region9
    $region8: #{tpu_custom_call.1} parent=1 // pred_region
      %s33 = ssub.s32 256, 256
      %34 = vsyncadd [#allocation7], %s33
      %s35 = sshll.u32 [#allocation6], 4
      %s36 = int_to_ptr.vmem [resolvable:$true] %s35
      %41 = dma.hbm_to_vmem [thread:$0]  %s1, 256, %s36, [#allocation7], 128, 128, 8
    $region9: #{tpu_custom_call.1} parent=1 // pred_fallthru
      _
    // Predicated region
    $region10: #{tpu_custom_call.1} parent=1 // pred_check
      _
    $region11: #{tpu_custom_call.1} parent=1 // pred_check_branch
      %43 = sbr.rel (0) target = $region13
    $region12: #{tpu_custom_call.1} parent=1 // pred_region
      %s45 = ssub.s32 512, 512
      %46 = vsyncadd [#allocation7], %s45
      %s47 = sshll.u32 [#allocation8], 4
      %s48 = int_to_ptr.vmem [resolvable:$true] %s47
      %53 = dma.hbm_to_vmem [thread:$0]  %s2, 512, %s48, [#allocation7], 128, 128, 8
    $region13: #{tpu_custom_call.1} parent=1 // pred_fallthru
      _
    // Predicated region
    $region14: #{tpu_custom_call.1} parent=1 // pred_check
      _
    $region15: #{tpu_custom_call.1} parent=1 // pred_check_branch
      %55 = sbr.rel (0) target = $region17
    $region16: #{tpu_custom_call.1} parent=1 // pred_region
      %s57 = ssub.s32 1024, 1024
      %58 = vsyncadd [#allocation10], %s57
      %s59 = sshll.u32 [#allocation9], 4
      %s60 = int_to_ptr.vmem [resolvable:$true] %s59
      %65 = dma.hbm_to_vmem [thread:$0]  %s3, 1024, %s60, [#allocation10], 128, 128, 8
    $region17: #{tpu_custom_call.1} parent=1 // pred_fallthru
      _
    // Predicated region
    $region18: #{tpu_custom_call.1} parent=1 // pred_check
      _
    $region19: #{tpu_custom_call.1} parent=1 // pred_check_branch
      %67 = sbr.rel (0) target = $region21
    $region20: #{tpu_custom_call.1} parent=1 // pred_region
      _
    $region21: #{tpu_custom_call.1} parent=1 // pred_fallthru
      _
    // Predicated region
    $region22: #{tpu_custom_call.1} parent=1 // pred_check
      _
    $region23: #{tpu_custom_call.1} parent=1 // pred_check_branch
      %69 = sbr.rel (0) target = $region25
    $region24: #{tpu_custom_call.1} parent=1 // pred_region
      _
    $region25: #{tpu_custom_call.1} parent=1 // pred_fallthru
      _
    // Predicated region
    $region26: #{tpu_custom_call.1} parent=1 // pred_check
      _
    $region27: #{tpu_custom_call.1} parent=1 // pred_check_branch
      %71 = sbr.rel (0) target = $region29
    $region28: #{tpu_custom_call.1} parent=1 // pred_region
      _
    $region29: #{tpu_custom_call.1} parent=1 // pred_fallthru
      _
    // Predicated region
    $region30: #{tpu_custom_call.1} parent=1 // pred_check
      _
    $region31: #{tpu_custom_call.1} parent=1 // pred_check_branch
      %73 = sbr.rel (0) target = $region33
    $region32: #{tpu_custom_call.1} parent=1 // pred_region
      %74 = dma.done [#allocation4], 256
    $region33: #{tpu_custom_call.1} parent=1 // pred_fallthru
      _
    // Predicated region
    $region34: #{tpu_custom_call.1} parent=1 // pred_check
      _
    $region35: #{tpu_custom_call.1} parent=1 // pred_check_branch
      %76 = sbr.rel (0) target = $region37
    $region36: #{tpu_custom_call.1} parent=1 // pred_region
      %77 = dma.done [#allocation7], 256
    $region37: #{tpu_custom_call.1} parent=1 // pred_fallthru
      _
    // Predicated region
    $region38: #{tpu_custom_call.1} parent=1 // pred_check
      _
    $region39: #{tpu_custom_call.1} parent=1 // pred_check_branch
      %79 = sbr.rel (0) target = $region41
    $region40: #{tpu_custom_call.1} parent=1 // pred_region
      %80 = dma.done [#allocation7], 512
    $region41: #{tpu_custom_call.1} parent=1 // pred_fallthru
      _
    // Predicated region
    $region42: #{tpu_custom_call.1} parent=1 // pred_check
      _
    $region43: #{tpu_custom_call.1} parent=1 // pred_check_branch
      %82 = sbr.rel (0) target = $region45
    $region44: #{tpu_custom_call.1} parent=1 // pred_region
      %83 = dma.done [#allocation10], 1024
    $region45: #{tpu_custom_call.1} parent=1 // pred_fallthru
      _
    %v84 = vld [vmem:[#allocation3] sm:$0xff]
    %v85 = vld [vmem:[#allocation3 + $0x8] sm:$0xff]
    %v86 = vld [vmem:[#allocation8] sm:$0xff]
    %v87 = vld [vmem:[#allocation8 + $0x8] sm:$0xff]
    %v88 = vld [vmem:[#allocation8 + $0x10] sm:$0xff]
    %v89 = vld [vmem:[#allocation8 + $0x18] sm:$0xff]
    %v90 = vld [vmem:[#allocation6] sm:$0xff]
    %v91 = vld [vmem:[#allocation6 + $0x8] sm:$0xff]
    %v92 = vld [vmem:[#allocation9] sm:$0xff]
    %v93 = vld [vmem:[#allocation9 + $0x8] sm:$0xff]
    %v94 = vld [vmem:[#allocation9 + $0x10] sm:$0xff]
    %v95 = vld [vmem:[#allocation9 + $0x18] sm:$0xff]
    %v96 = vld [vmem:[#allocation9 + $0x20] sm:$0xff]
    %v97 = vld [vmem:[#allocation9 + $0x28] sm:$0xff]
    %v98 = vld [vmem:[#allocation9 + $0x30] sm:$0xff]
    %v99 = vld [vmem:[#allocation9 + $0x38] sm:$0xff]
    %vm100 = vcmask 523264
    %v102 = vsel %vm100, %v90, 0
    %v105 = vsel %vm100, %v91, 0
    %107 = vmatprep.subr.mxu0 0.0
    %108 = vmatpush1.msra.mxu0 %v92
    %109 = vmatprep.subr.mxu0 0.0
    %110 = vmatpush1.msra.mxu0 %v93
    %111 = vmatprep.subr.mxu0 0.0
    %112 = vmatpush1.msra.mxu0 %v94
    %113 = vmatprep.subr.mxu0 0.0
    %114 = vmatpush1.msra.mxu0 %v95
    %115 = vmatprep.subr.mxu0 0.0
    %116 = vmatpush1.msra.mxu0 %v96
    %117 = vmatprep.subr.mxu0 0.0
    %118 = vmatpush1.msra.mxu0 %v97
    %119 = vmatprep.subr.mxu0 0.0
    %120 = vmatpush1.msra.mxu0 %v98
    %121 = vmatprep.subr.mxu0 0.0
    %122 = vmatpush1.msra.mxu0 %v99
    %123 = vmatprep.subr.mxu0 0.0
    %124 = vmatpush1.msra.mxu0 0.0
    %125 = vmatprep.subr.mxu0 0.0
    %126 = vmatpush1.msra.mxu0 0.0
    %127 = vmatprep.subr.mxu0 0.0
    %128 = vmatpush1.msra.mxu0 0.0
    %129 = vmatprep.subr.mxu0 0.0
    %130 = vmatpush1.msra.mxu0 0.0
    %131 = vmatprep.subr.mxu0 0.0
    %132 = vmatpush1.msra.mxu0 0.0
    %133 = vmatprep.subr.mxu0 0.0
    %134 = vmatpush1.msra.mxu0 0.0
    %135 = vmatprep.subr.mxu0 0.0
    %136 = vmatpush1.msra.mxu0 0.0
    %137 = vmatprep.subr.mxu0 0.0
    %138 = vmatpush1.msra.mxu0 0.0
    %139 = vmatprep.subr.mxu0 0.0
    %140 = vmatpush1.msra.mxu0 0.0
    %141 = vmatprep.subr.mxu0 0.0
    %142 = vmatpush1.msra.mxu0 0.0
    %143 = vmatprep.subr.mxu0 0.0
    %144 = vmatpush1.msra.mxu0 0.0
    %145 = vmatprep.subr.mxu0 0.0
    %146 = vmatpush1.msra.mxu0 0.0
    %147 = vmatprep.subr.mxu0 0.0
    %148 = vmatpush1.msra.mxu0 0.0
    %149 = vmatprep.subr.mxu0 0.0
    %150 = vmatpush1.msra.mxu0 0.0
    %151 = vmatprep.subr.mxu0 0.0
    %152 = vmatpush1.msra.mxu0 0.0
    %153 = vmatprep.subr.mxu0 0.0
    %154 = vmatpush1.msra.mxu0 0.0
    %155 = vmatprep.subr.mxu0 0.0
    %156 = vmatpush1.msra.mxu0 0.0
    %157 = vmatprep.subr.mxu0 0.0
    %158 = vmatpush1.msra.mxu0 0.0
    %159 = vmatprep.subr.mxu0 0.0
    %160 = vmatpush1.msra.mxu0 0.0
    %161 = vmatprep.subr.mxu0 0.0
    %162 = vmatpush1.msra.mxu0 0.0
    %163 = vmatprep.subr.mxu0 0.0
    %164 = vmatpush1.msra.mxu0 0.0
    %165 = vmatprep.subr.mxu0 0.0
    %166 = vmatpush1.msra.mxu0 0.0
    %167 = vmatprep.subr.mxu0 0.0
    %168 = vmatpush1.msra.mxu0 0.0
    %169 = vmatprep.subr.mxu0 0.0
    %170 = vmatpush1.msra.mxu0 0.0
    %171 = vmatprep.mubr.f32.mxu0 0.0
    %172 = vmatmul.mubr.f32.gmra.mrb[0].mxu0 %v102
    %v173 = vpop.f32.mrb[0].mxu0
    %v174 = vadd.f32 0.0, %v173
    %v175 = vpop.f32.mrb[0].mxu0
    %176 = vmatprep.mubr.f32.mxu0 0.0
    %177 = vmatmul.mubr.f32.gmra.mrb[0].mxu0 %v105
    %v178 = vpop.f32.mrb[0].mxu0
    %v179 = vadd.f32 0.0, %v178
    %v180 = vpop.f32.mrb[0].mxu0
    %181 = vdwg.mxu0
    %vm182 = vcmask 261120
    %v184 = vsel %vm182, %v84, 0
    %v187 = vsel %vm182, %v85, 0
    %189 = vmatprep.subr.mxu0 0.0
    %190 = vmatpush1.msra.mxu0 %v86
    %191 = vmatprep.subr.mxu0 0.0
    %192 = vmatpush1.msra.mxu0 %v87
    %193 = vmatprep.subr.mxu0 0.0
    %194 = vmatpush1.msra.mxu0 %v88
    %195 = vmatprep.subr.mxu0 0.0
    %196 = vmatpush1.msra.mxu0 %v89
    %197 = vmatprep.subr.mxu0 0.0
    %198 = vmatpush1.msra.mxu0 0.0
    %199 = vmatprep.subr.mxu0 0.0
    %200 = vmatpush1.msra.mxu0 0.0
    %201 = vmatprep.subr.mxu0 0.0
    %202 = vmatpush1.msra.mxu0 0.0
    %203 = vmatprep.subr.mxu0 0.0
    %204 = vmatpush1.msra.mxu0 0.0
    %205 = vmatprep.subr.mxu0 0.0
    %206 = vmatpush1.msra.mxu0 0.0
    %207 = vmatprep.subr.mxu0 0.0
    %208 = vmatpush1.msra.mxu0 0.0
    %209 = vmatprep.subr.mxu0 0.0
    %210 = vmatpush1.msra.mxu0 0.0
    %211 = vmatprep.subr.mxu0 0.0
    %212 = vmatpush1.msra.mxu0 0.0
    %213 = vmatprep.subr.mxu0 0.0
    %214 = vmatpush1.msra.mxu0 0.0
    %215 = vmatprep.subr.mxu0 0.0
    %216 = vmatpush1.msra.mxu0 0.0
    %217 = vmatprep.subr.mxu0 0.0
    %218 = vmatpush1.msra.mxu0 0.0
    %219 = vmatprep.subr.mxu0 0.0
    %220 = vmatpush1.msra.mxu0 0.0
    %221 = vmatprep.subr.mxu0 0.0
    %222 = vmatpush1.msra.mxu0 0.0
    %223 = vmatprep.subr.mxu0 0.0
    %224 = vmatpush1.msra.mxu0 0.0
    %225 = vmatprep.subr.mxu0 0.0
    %226 = vmatpush1.msra.mxu0 0.0
    %227 = vmatprep.subr.mxu0 0.0
    %228 = vmatpush1.msra.mxu0 0.0
    %229 = vmatprep.subr.mxu0 0.0
    %230 = vmatpush1.msra.mxu0 0.0
    %231 = vmatprep.subr.mxu0 0.0
    %232 = vmatpush1.msra.mxu0 0.0
    %233 = vmatprep.subr.mxu0 0.0
    %234 = vmatpush1.msra.mxu0 0.0
    %235 = vmatprep.subr.mxu0 0.0
    %236 = vmatpush1.msra.mxu0 0.0
    %237 = vmatprep.subr.mxu0 0.0
    %238 = vmatpush1.msra.mxu0 0.0
    %239 = vmatprep.subr.mxu0 0.0
    %240 = vmatpush1.msra.mxu0 0.0
    %241 = vmatprep.subr.mxu0 0.0
    %242 = vmatpush1.msra.mxu0 0.0
    %243 = vmatprep.subr.mxu0 0.0
    %244 = vmatpush1.msra.mxu0 0.0
    %245 = vmatprep.subr.mxu0 0.0
    %246 = vmatpush1.msra.mxu0 0.0
    %247 = vmatprep.subr.mxu0 0.0
    %248 = vmatpush1.msra.mxu0 0.0
    %249 = vmatprep.subr.mxu0 0.0
    %250 = vmatpush1.msra.mxu0 0.0
    %251 = vmatprep.subr.mxu0 0.0
    %252 = vmatpush1.msra.mxu0 0.0
    %253 = vmatprep.mubr.f32.mxu0 0.0
    %254 = vmatmul.mubr.f32.gmra.mrb[0].mxu0 %v184
    %v255 = vpop.f32.mrb[0].mxu0
    %v256 = vadd.f32 %v174, %v255
    %v257 = vpop.f32.mrb[0].mxu0
    %258 = vmatprep.mubr.f32.mxu0 0.0
    %259 = vmatmul.mubr.f32.gmra.mrb[0].mxu0 %v187
    %v260 = vpop.f32.mrb[0].mxu0
    %v261 = vadd.f32 %v179, %v260
    %v262 = vpop.f32.mrb[0].mxu0
    %263 = vdwg.mxu0
    %v264 = vld [vmem:[%s4] sm:$0x1]
    %v266 = vlaneseq
    %v267 = vshrl.u32 %v266, 7
    %v268 = vsub.s32 0, %v267
    %v269 = vrot.slane %v264, %v268
    %v271 = vadd.f32 %v256, %v269
    %v272 = vadd.f32 %v261, %v269
    %v273 = vmul.f32 %v271, 0.2
    %v274 = vmul.f32 %v272, 0.2
    %v275 = vmax.f32 %v271, %v273
    %v276 = vmax.f32 %v272, %v274
    %v277 = vld [vmem:[%s5] sm:$0x1]
    %v278 = vld [vmem:[#allocation2] sm:$0x1]
    %280 = vset.pattern.permute.xlu0 0
    %281 = vperm.xlu0 %280, %v278
    %v282 = vpop.permute.xlu0 %281
    %v284 = vlaneseq
    %v285 = vshrl.u32 %v284, 7
    %v286 = vsub.s32 0, %v285
    %v287 = vrot.slane %v282, %v286
    %288 = vmatprep.subr.mxu0 0.0
    %289 = vmatpush1.xpose.msra.mxu0 %v275
    %290 = vmatprep.subr.mxu0 0.0
    %291 = vmatpush1.xpose.msra.mxu0 %v276
    %292 = vmatprep.subr.mxu0 0.0
    %293 = vmatpush1.xpose.msra.mxu0 0.0
    %294 = vmatprep.subr.mxu0 0.0
    %295 = vmatpush1.xpose.msra.mxu0 0.0
    %296 = vmatprep.subr.mxu0 0.0
    %297 = vmatpush1.xpose.msra.mxu0 0.0
    %298 = vmatprep.subr.mxu0 0.0
    %299 = vmatpush1.xpose.msra.mxu0 0.0
    %300 = vmatprep.subr.mxu0 0.0
    %301 = vmatpush1.xpose.msra.mxu0 0.0
    %302 = vmatprep.subr.mxu0 0.0
    %303 = vmatpush1.xpose.msra.mxu0 0.0
    %304 = vmatprep.subr.mxu0 0.0
    %305 = vmatpush1.xpose.msra.mxu0 0.0
    %306 = vmatprep.subr.mxu0 0.0
    %307 = vmatpush1.xpose.msra.mxu0 0.0
    %308 = vmatprep.subr.mxu0 0.0
    %309 = vmatpush1.xpose.msra.mxu0 0.0
    %310 = vmatprep.subr.mxu0 0.0
    %311 = vmatpush1.xpose.msra.mxu0 0.0
    %312 = vmatprep.subr.mxu0 0.0
    %313 = vmatpush1.xpose.msra.mxu0 0.0
    %314 = vmatprep.subr.mxu0 0.0
    %315 = vmatpush1.xpose.msra.mxu0 0.0
    %316 = vmatprep.subr.mxu0 0.0
    %317 = vmatpush1.xpose.msra.mxu0 0.0
    %318 = vmatprep.subr.mxu0 0.0
    %319 = vmatpush1.xpose.msra.mxu0 0.0
    %320 = vmatprep.subr.mxu0 0.0
    %321 = vmatpush1.xpose.msra.mxu0 0.0
    %322 = vmatprep.subr.mxu0 0.0
    %323 = vmatpush1.xpose.msra.mxu0 0.0
    %324 = vmatprep.subr.mxu0 0.0
    %325 = vmatpush1.xpose.msra.mxu0 0.0
    %326 = vmatprep.subr.mxu0 0.0
    %327 = vmatpush1.xpose.msra.mxu0 0.0
    %328 = vmatprep.subr.mxu0 0.0
    %329 = vmatpush1.xpose.msra.mxu0 0.0
    %330 = vmatprep.subr.mxu0 0.0
    %331 = vmatpush1.xpose.msra.mxu0 0.0
    %332 = vmatprep.subr.mxu0 0.0
    %333 = vmatpush1.xpose.msra.mxu0 0.0
    %334 = vmatprep.subr.mxu0 0.0
    %335 = vmatpush1.xpose.msra.mxu0 0.0
    %336 = vmatprep.subr.mxu0 0.0
    %337 = vmatpush1.xpose.msra.mxu0 0.0
    %338 = vmatprep.subr.mxu0 0.0
    %339 = vmatpush1.xpose.msra.mxu0 0.0
    %340 = vmatprep.subr.mxu0 0.0
    %341 = vmatpush1.xpose.msra.mxu0 0.0
    %342 = vmatprep.subr.mxu0 0.0
    %343 = vmatpush1.xpose.msra.mxu0 0.0
    %344 = vmatprep.subr.mxu0 0.0
    %345 = vmatpush1.xpose.msra.mxu0 0.0
    %346 = vmatprep.subr.mxu0 0.0
    %347 = vmatpush1.xpose.msra.mxu0 0.0
    %348 = vmatprep.subr.mxu0 0.0
    %349 = vmatpush1.xpose.msra.mxu0 0.0
    %350 = vmatprep.subr.mxu0 0.0
    %351 = vmatpush1.xpose.msra.mxu0 0.0
    %352 = vmatprep.mubr.f32.mxu0 0.0
    %353 = vmatmul.mubr.f32.gmra.mrb[0].mxu0 %v277
    %v354 = vpop.f32.mrb[0].mxu0
    %v355 = vadd.f32 %v287, %v354
    %v356 = vpop.f32.mrb[0].mxu0
    %357 = vdwg.mxu0
    %vm358 = vcmask 122880
    %359 = vst.msk [vmem:[#allocation11] sm:$0x1] %vm358, %v355
    // Predicated region
    $region46: #{tpu_custom_call.1} parent=1 // pred_check
      _
    $region47: #{tpu_custom_call.1} parent=1 // pred_check_branch
      %361 = sbr.rel (0) target = $region49
    $region48: #{tpu_custom_call.1} parent=1 // pred_region
      %s363 = ssub.s32 16, 16
      %364 = vsyncadd [#allocation5], %s363
      %s366 = sshll.u32 [#allocation11], 4
      %s367 = int_to_ptr.vmem [resolvable:$true] %s366
      %369 = dma.vmem_to_hbm [thread:$0]  %s367, 16, %s7, [#allocation5]
    $region49: #{tpu_custom_call.1} parent=1 // pred_fallthru
      _
    // Predicated region
    $region50: #{tpu_custom_call.1} parent=1 // pred_check
      _
    $region51: #{tpu_custom_call.1} parent=1 // pred_check_branch
      %371 = sbr.rel (0) target = $region53
    $region52: #{tpu_custom_call.1} parent=1 // pred_region
      %372 = dma.done [#allocation5], 16
    $region53: #{tpu_custom_call.1} parent=1 // pred_fallthru
      _
    %373 = vsyncpa [#allocation4], 1
    %374 = vsyncpa [#allocation7], 1
    %375 = vsyncpa [#allocation10], 1
    %376 = vsyncpa [#allocation5], 1

</llo_original>
